<compile_context>
chip_gen: v6e
topology: v6e:2x2x1
jax: 0.10.0
libtpu: 0.0.40
codegen_flags: <defaults>
</compile_context>

<pallas_src>
import functools
import math

import jax
import jax.numpy as jnp
from jax.experimental import pallas as pl
from jax.experimental.pallas import tpu as pltpu


def _pos_emb_kernel(time_ref, out_ref, *, half_dim: int, neg_scale: float):
    """One batch tile: out[:, :H] = sin(t*freqs), out[:, H:] = cos(t*freqs)."""
    # In-kernel freqs: one vreg of iota+exp per grid step (EUP slot) is negligible
    # next to the VALU-bound sin/cos polynomials and removes a per-step (1, H)
    # input DMA.  Do NOT move emb = t*freqs into the wrapper: that adds ~50% more
    # HBM traffic for zero VALU savings.
    lane = jax.lax.broadcasted_iota(jnp.int32, (1, half_dim), 1).astype(jnp.float32)
    freqs = jnp.exp(lane * neg_scale)                               # (1, H)   EUP
    t = time_ref[...]                                               # (TB, 1)
    emb = t * freqs                                                 # (TB, H)  VPU broadcast-mul
    # Two direct slab stores instead of concatenate: no (TB, dim) VMEM temporary
    # and no lane-offset copy.  The auto-routed Pallas path is only taken when
    # half_dim % 128 == 0, so both stores are lane-aligned, unmasked vst.
    out_ref[:, :half_dim] = jnp.sin(emb).astype(out_ref.dtype)
    out_ref[:, half_dim:] = jnp.cos(emb).astype(out_ref.dtype)


def _round_up(x: int, m: int) -> int:
    return ((x + m - 1) // m) * m


def _pick_batch_tile(b: int, dim: int, out_bytes: int) -> int:
    """Largest batch tile that (a) keeps the per-step VMEM footprint under a
    generation-safe budget, (b) is sublane-aligned, and (c) leaves >= 2 grid
    steps so v7x megacore can shard the parallel axis across both TensorCores.

    Per-row VMEM footprint estimate:
        2 * dim * out_bytes    double-buffered output block
      + 6 * dim                f32 emb / sin / cos temporaries (3 * half_dim * 4)
      + 8                      double-buffered (tb, 1) f32 input block
    Total budget 12 MiB: inside v5e's 16 MiB scoped-VMEM default (the smallest
    of v5e/v6e/v7x), so no vmem_limit_bytes override is needed.
    """
    sub = 16 if out_bytes == 2 else 8       # bf16 packs 2 rows per sublane
    if b <= sub:
        return b                            # full-extent block is always legal
    per_row = dim * (2 * out_bytes + 6) + 8
    budget_rows = max(sub, (12 * 1024 * 1024) // per_row)
    tb = min(b, budget_rows)
    if b >= 2 * sub:
        # Guarantee grid >= 2 so dimension_semantics=("parallel",) actually uses
        # both v7x TensorCores; neutral on single-TC v5e/v6e.
        tb = min(tb, _round_up(pl.cdiv(b, 2), sub))
    if tb < b:
        tb = max(sub, (tb // sub) * sub)    # sublane-aligned tile
    return tb


def position_embeddings(time: jax.Array, dim: int, *,
                        out_dtype=jnp.float32, use_pallas=None) -> jax.Array:
    """JAX/Pallas equivalent of Position_Embeddings.forward.

    Returns (B, dim): [sin(t * freqs) | cos(t * freqs)].
    use_pallas=None (default) auto-routes between the Pallas kernel and a fused
    pure-JAX path based on lane alignment and output size.
    """
    assert dim % 2 == 0, "dim must be even"
    half_dim = dim // 2
    assert half_dim > 1, "dim must be >= 4 (scale = log(10000)/(half_dim-1))"
    neg_scale = -math.log(10000.0) / (half_dim - 1)

    b = time.shape[0]
    time2d = time.astype(jnp.float32).reshape(b, 1)
    out_bytes = jnp.dtype(out_dtype).itemsize

    if use_pallas is None:
        # Pallas only wins when the cos slab store is lane-aligned (unmasked vst)
        # and the output is big enough to amortize the pallas_call fixed cost.
        use_pallas = (half_dim % 128 == 0) and (b * dim * out_bytes >= 256 * 1024)

    if not use_pallas:
        freqs = jnp.exp(jnp.arange(half_dim, dtype=jnp.float32) * neg_scale)
        emb = time2d * freqs[None, :]
        return jnp.concatenate([jnp.sin(emb), jnp.cos(emb)], axis=-1).astype(out_dtype)

    tb = _pick_batch_tile(b, dim, out_bytes)
    grid = (pl.cdiv(b, tb),)

    kernel = functools.partial(_pos_emb_kernel, half_dim=half_dim, neg_scale=neg_scale)
    return pl.pallas_call(
        kernel,
        out_shape=jax.ShapeDtypeStruct((b, dim), out_dtype),
        grid=grid,
        in_specs=[pl.BlockSpec((tb, 1), lambda i: (i, 0))],
        out_specs=pl.BlockSpec((tb, dim), lambda i: (i, 0)),
        compiler_params=pltpu.CompilerParams(
            dimension_semantics=("parallel",)),
    )(time2d)


def _reference(time: jax.Array, dim: int) -> jax.Array:
    half_dim = dim // 2
    scale = math.log(10000.0) / (half_dim - 1)
    freqs = jnp.exp(jnp.arange(half_dim, dtype=jnp.float32) * -scale)
    emb = time.astype(jnp.float32)[:, None] * freqs[None, :]
    return jnp.concatenate([jnp.sin(emb), jnp.cos(emb)], axis=-1)


if __name__ == "__main__":
    key = jax.random.PRNGKey(0)
    k1, k2, k3 = jax.random.split(key, 3)

    # 1) Small diffusion-timestep shape (B=8, dim=32): auto-routes to the
    #    pure-JAX path (half_dim=16 not lane-aligned, KiB-scale output).
    t_small = jax.random.uniform(k1, (8,), jnp.float32, 0.0, 1000.0)
    out_small = jax.block_until_ready(position_embeddings(t_small, 32))
    assert out_small.shape == (8, 32), out_small.shape
    assert jnp.allclose(out_small, _reference(t_small, 32), atol=1e-3, rtol=1e-4), \
        "small (auto JAX path) mismatch"

    # 2) Forced Pallas at a small shape: exercises the kernel body and the
    #    two-grid-step tiling (tb=8, grid=(2,)); correctness-only (masked stores
    #    here are expected and why auto-routing avoids this shape).
    t_forced = jax.random.uniform(k2, (16,), jnp.float32, 0.0, 1000.0)
    out_forced = jax.block_until_ready(
        position_embeddings(t_forced, 32, use_pallas=True))
    assert out_forced.shape == (16, 32), out_forced.shape
    assert jnp.allclose(out_forced, _reference(t_forced, 32), atol=1e-3, rtol=1e-4), \
        "forced-pallas mismatch"

    # 3) Lane-aligned shape that auto-routes to Pallas (half_dim=128, 512 KiB
    #    output): tb=256, grid=(2,), unmasked slab stores, both v7x TCs busy.
    t_big = jax.random.uniform(k3, (512,), jnp.float32, 0.0, 1000.0)
    out_big = jax.block_until_ready(position_embeddings(t_big, 256))
    assert out_big.shape == (512, 256), out_big.shape
    assert jnp.allclose(out_big, _reference(t_big, 256), atol=1e-3, rtol=1e-4), \
        "big (auto Pallas path) mismatch"

    # 4) bf16 output variant of (3): halves the output HBM stream; tile rounded
    #    to a multiple of 16 rows.
    out_bf16 = jax.block_until_ready(
        position_embeddings(t_big, 256, out_dtype=jnp.bfloat16))
    assert out_bf16.dtype == jnp.bfloat16
    assert jnp.allclose(out_bf16.astype(jnp.float32), _reference(t_big, 256),
                        atol=2e-2, rtol=1e-2), "bf16 mismatch"

    print("KERNEL_OK")
</pallas_src>

<mosaic_0001>
module attributes {stable_mosaic.version = 11 : i64} {
  func.func @_pos_emb_kernel(%arg0: i32, %arg1: memref<8x1xf32, #tpu.memory_space<vmem>>, %arg2: memref<8x32xf32, #tpu.memory_space<vmem>>) attributes {dimension_semantics = [#tpu.dimension_semantics<parallel>], iteration_bounds = array<i64: 2>, scalar_prefetch = 0 : i64, scratch_operands = 0 : i64, tpu.core_type = #tpu.core_type<tc>, window_params = [{transform_indices = @transform_0, window_bounds = array<i64: 8, 1>}, {transform_indices = @transform_1, window_bounds = array<i64: 8, 32>}]} {
    %0 = tpu.iota {dimensions = array<i32: 1>} : vector<1x16xi32>
    %1 = arith.sitofp %0 : vector<1x16xi32> to vector<1x16xf32>
    %cst = arith.constant -0.614022672 : f32
    %2 = vector.broadcast %cst : f32 to vector<1x16xf32>
    %3 = arith.mulf %1, %2 : vector<1x16xf32>
    %4 = math.exp %3 : vector<1x16xf32>
    %c0 = arith.constant 0 : index
    %c0_0 = arith.constant 0 : index
    %5 = vector.load %arg1[%c0, %c0_0] : memref<8x1xf32, #tpu.memory_space<vmem>>, vector<8x1xf32>
    %6 = vector.broadcast %5 : vector<8x1xf32> to vector<8x16xf32>
    %7 = vector.broadcast %4 : vector<1x16xf32> to vector<8x16xf32>
    %8 = arith.mulf %6, %7 : vector<8x16xf32>
    %9 = math.sin %8 : vector<8x16xf32>
    %c0_1 = arith.constant 0 : index
    %c0_2 = arith.constant 0 : index
    %10 = vector.load %arg2[%c0_1, %c0_2] : memref<8x32xf32, #tpu.memory_space<vmem>>, vector<8x16xf32>
    tpu.vector_store %arg2[%c0_1, %c0_2], %9 {strides = array<i32>} : memref<8x32xf32, #tpu.memory_space<vmem>>, vector<8x16xf32>,
    %11 = math.cos %8 : vector<8x16xf32>
    %c0_3 = arith.constant 0 : index
    %c16 = arith.constant 16 : index
    %12 = vector.load %arg2[%c0_3, %c16] : memref<8x32xf32, #tpu.memory_space<vmem>>, vector<8x16xf32>
    tpu.vector_store %arg2[%c0_3, %c16], %11 {strides = array<i32>} : memref<8x32xf32, #tpu.memory_space<vmem>>, vector<8x16xf32>,
    return
  }
  func.func @transform_0(%arg0: i32) -> (i32, i32) {
    %c0_i32 = arith.constant 0 : i32
    %c0_i32_0 = arith.constant 0 : i32
    return %arg0, %c0_i32 : i32, i32
  }
  func.func @transform_1(%arg0: i32) -> (i32, i32) {
    %c0_i32 = arith.constant 0 : i32
    %c0_i32_0 = arith.constant 0 : i32
    return %arg0, %c0_i32 : i32, i32
  }
}

</mosaic_0001>

<llo_original>
// kernel: tpu_custom_call.1
$region0: #{tpu_custom_call.1}
  #allocation0 [shape = 'u32[]', space=smem, size = 0x4, offset = 0x4, fixed_abs, tag = 'smem constant byte address 0x4 - core index']
  #allocation1 [shape = 'u32[144,128]{1,0:T(1,128)}', space=vmem, size = 0x12000, scoped, tag = 'internal scratch']
  %s0 = inlined_call_operand.vmem [shape: f32[16,1], index: 0, kind: input, shape index: {}]
  %s1 = inlined_call_operand.hbm [shape: f32[16,32], index: 1, kind: output, shape index: {}]
  %s2 = sld [smem:[#allocation0]]
  $region37: #{tpu_custom_call.1} parent=0
    _
  %s4 = ssub.s32 1, %s2
  %s5 = scalar_select 0, %s4, %s2
  $region1: #{tpu_custom_call.1} parent=0
    #allocation2 [shape = 'u8[8192]{0}', space=vmem, size = 0x2000, scoped, tag = 'output window, operand 0']
    #allocation3 [shape = 's32[2]{0}', space=sflag, size = 0x8, scoped, tag = 'scoped memory for tpu_custom_call.1']
    %6 = vsyncpa [#allocation3], 0
    %s7 = scalar_lea.sflag [#allocation3], 1
    %8 = vsyncpa %s7, 0
    loop: start=0, step=1, limit=4
    $region2: #{tpu_custom_call.1} parent=1 // loop_pre_header
      _
    $region3: #{tpu_custom_call.1} parent=1 // loop_header
      %s10 = sphi 0, %s14
      %p11 = scmp.ge.s32.totalorder %s10, 4
      %s20 = sphi 0, %s22
      %s23 = sphi 0, %s20
      %s24 = sphi 0, %s23
      %s40 = sphi 0, %s24
      %s46 = sphi 0, %s48
      %s49 = sphi 0, %s46
      %s50 = sphi 0, %s49
      %s66 = sphi 0, %s50
    $region4: #{tpu_custom_call.1} parent=1 // loop_header_branch
      %13 = sbr.rel (%p11) target = $region8
    $region5: #{tpu_custom_call.1} parent=1 // loop_body
      %s15 = ssub.s32 %s10, 1
      %s16 = ssub.s32 %s10, 2
      %s17 = sadd.s32 %s10, 1
      %s18 = ssub.s32 %s10, %s17
      %p19 = scmp.eq.s32.totalorder %s18, 0
      %s21 = sadd.s32 %s20, 1
      %s22 = scalar_select %p19, %s20, %s21
      %p25 = pneg %p19
      %p26 = scmp.eq.s32.totalorder %s10, 1
      %p27 = por %p25, %p26
      %p28 = scmp.ne.s32.totalorder %s20, %s23
      %p29 = scmp.eq.s32.totalorder %s10, 0
      %p30 = por %p28, %p29
      %p31 = scmp.ne.s32.totalorder %s20, %s23
      %p32 = scmp.eq.s32.totalorder %s15, 1
      %p33 = por %p31, %p32
      %p34 = scmp.ne.s32.totalorder %s23, %s24
      %p35 = scmp.eq.s32.totalorder %s15, 0
      %p36 = por %p34, %p35
      %p37 = scmp.ne.s32.totalorder %s23, %s24
      %p38 = scmp.eq.s32.totalorder %s16, 1
      %p39 = por %p37, %p38
      %p41 = scmp.ne.s32.totalorder %s24, %s40
      %p42 = scmp.eq.s32.totalorder %s16, 0
      %p43 = por %p41, %p42
      %s44 = ssub.s32 %s10, %s17
      %p45 = scmp.eq.s32.totalorder %s44, 0
      %s47 = sadd.s32 %s46, 1
      %s48 = scalar_select %p45, %s46, %s47
      %p51 = pneg %p45
      %p52 = scmp.eq.s32.totalorder %s10, 1
      %p53 = por %p51, %p52
      %p54 = scmp.ne.s32.totalorder %s46, %s49
      %p55 = scmp.eq.s32.totalorder %s10, 0
      %p56 = por %p54, %p55
      %p57 = scmp.ne.s32.totalorder %s46, %s49
      %p58 = scmp.eq.s32.totalorder %s15, 1
      %p59 = por %p57, %p58
      %p60 = scmp.ne.s32.totalorder %s49, %s50
      %p61 = scmp.eq.s32.totalorder %s15, 0
      %p62 = por %p60, %p61
      %p63 = scmp.ne.s32.totalorder %s49, %s50
      %p64 = scmp.eq.s32.totalorder %s16, 1
      %p65 = por %p63, %p64
      %p67 = scmp.ne.s32.totalorder %s50, %s66
      %p68 = scmp.eq.s32.totalorder %s16, 0
      %p69 = por %p67, %p68
      %p70 = scmp.le.s32.totalorder 1, %s10
      %p71 = scmp.lt.s32.totalorder %s10, 3
      %p72 = pnand %p70, %p71
      %p73 = pneg %p72
      // Predicated region
      $region9: #{tpu_custom_call.1} parent=5 // pred_check
        _
      $region10: #{tpu_custom_call.1} parent=5 // pred_check_branch
        %75 = sbr.rel (%p72) target = $region12
      $region11: #{tpu_custom_call.1} parent=5 // pred_region
        %s76 = ssub.s32 %s10, 1
      $region12: #{tpu_custom_call.1} parent=5 // pred_fallthru
        _
      %p77 = scmp.lt.s32.totalorder %s10, 2
      // Predicated region
      $region13: #{tpu_custom_call.1} parent=5 // pred_check
        %p78 = pneg %p77
      $region14: #{tpu_custom_call.1} parent=5 // pred_check_branch
        %80 = sbr.rel (%p78) target = $region16
      $region15: #{tpu_custom_call.1} parent=5 // pred_region
        // Predicated region
        $region17: #{tpu_custom_call.1} parent=15 // pred_check
          %p81 = pneg %p30
        $region18: #{tpu_custom_call.1} parent=15 // pred_check_branch
          %83 = sbr.rel (%p81) target = $region20
        $region19: #{tpu_custom_call.1} parent=15 // pred_region
          %p84 = scmp.lt.s32.totalorder %s10, 1
          %s85 = scalar_select %p84, %s10, 1
          %s86 = smul.addr %s85, 8
          %s87 = scalar_lea.vmem %s0, %s86
        $region20: #{tpu_custom_call.1} parent=15 // pred_fallthru
          _
      $region16: #{tpu_custom_call.1} parent=5 // pred_fallthru
        _
      %p88 = scmp.le.s32.totalorder 1, %s10
      %p89 = scmp.lt.s32.totalorder %s10, 3
      %p90 = pnand %p88, %p89
      %p91 = pneg %p90
      // Predicated region
      $region21: #{tpu_custom_call.1} parent=5 // pred_check
        _
      $region22: #{tpu_custom_call.1} parent=5 // pred_check_branch
        %93 = sbr.rel (%p90) target = $region24
      $region23: #{tpu_custom_call.1} parent=5 // pred_region
        %s94 = ssub.s32 %s10, 1
        %p95 = scmp.lt.s32.totalorder %s15, 1
        %s96 = scalar_select %p95, %s15, 1
        %s97 = smul.addr %s96, 8
        %s98 = scalar_lea.vmem %s0, %s97
        %p99 = pneg %p36
        %p100 = pneg %p33
        %p101 = pneg %p62
        %p102 = pneg %p59
        %s103 = sand.u32 %s49, 1
        %s104 = scalar_lea.sflag [#allocation3], %s103
        %s105 = sand.u32 %s49, 1
        %s106 = smul.addr %s105, 8
        %s107 = scalar_lea.vmem [#allocation2], %s106
        %p108 = scmp.lt.s32.totalorder %s15, 1
        %s109 = scalar_select %p108, %s15, 1
        %s110 = smul.addr %s109, 8
        %s111 = scalar_lea.vmem %s0, %s110
        %v112 = vlaneseq
        %v113 = vand.u32 %v112, 127
        %v114 = vcvt.s32.f32 %v113
        %v115 = vmul.f32 %v114, -0.6140227
        %v116 = vmul.f32 %v115, 1.442695
        %v117 = vpow.pop %v116
        %v118 = vld [vmem:[%s111] sm:$0xff]
        %120 = vset.pattern.permute.xlu0 0
        %121 = vperm.xlu0 %120, %v118
        %v122 = vpop.permute.xlu0 %121
        %v124 = vmul.f32 %v122, %v117
        %v125 = vand.u32 2147483647, %v124
        %vm126 = vcmp.le.f32.partialorder %v125, 0.7853982
        %vm127 = vcmp.lt.s32.totalorder %v124, 0
        %v128 = vand.u32 %v124, 2139095040
        %v129 = vshrl.u32 %v128, 23
        %v130 = vsub.s32 %v129, 127
        %v131 = vand.u32 2147483647, %v124
        %v132 = vand.u32 %v131, 8388607
        %v133 = vor.u32 %v132, 8388608
        %v134 = vsub.s32 0, %v133
        %v135 = vadd.s32 %v130, 1
        %vm136 = vcmp.gt.s32.totalorder %v135, 0
        %v137 = vsel %vm136, %v135, 0
        %v138 = vshrl.u32 %v137, 5
        %v139 = vand.u32 %v137, 31
        %v140 = vsub.s32 32, %v139
        %v141 = vshrl.u32 683565275, %v140
        %v142 = vshll.u32 683565275, %v139
        %v143 = vshrl.u32 2475754826, %v140
        %v144 = vor.u32 %v142, %v143
        %v145 = vshll.u32 2475754826, %v139
        %v146 = vshrl.u32 2131351028, %v140
        %v147 = vor.u32 %v145, %v146
        %v148 = vshll.u32 2131351028, %v139
        %v149 = vshrl.u32 2102212464, %v140
        %v150 = vor.u32 %v148, %v149
        %v151 = vshll.u32 2102212464, %v139
        %v152 = vshrl.u32 920167782, %v140
        %v153 = vor.u32 %v151, %v152
        %v154 = vshll.u32 920167782, %v139
        %v155 = vshrl.u32 1326507024, %v140
        %v156 = vor.u32 %v154, %v155
        %vm157 = vcmp.lt.s32.totalorder %v138, 1
        %vm158 = vcmp.lt.s32.totalorder %v138, 2
        %vm159 = vcmp.lt.s32.totalorder %v138, 3
        %vm160 = vcmp.lt.s32.totalorder %v138, 4
        %v161 = vsel %vm157, %v141, %v144
        %v162 = vsel %vm160, %v150, 2102212464
        %v163 = vsel %vm159, %v147, %v162
        %v164 = vsel %vm158, %v161, %v163
        %v165 = vsel %vm157, %v144, %v147
        %v166 = vsel %vm160, %v153, 920167782
        %v167 = vsel %vm159, %v150, %v166
        %v168 = vsel %vm158, %v165, %v167
        %v169 = vsel %vm157, %v147, %v150
        %v170 = vsel %vm160, %v156, 1326507024
        %v171 = vsel %vm159, %v153, %v170
        %v172 = vsel %vm158, %v169, %v171
        %v173 = vshll.u32 %v133, 8
        %v174 = vmul.u32.u64.compose %v173, %v172
        %v175 = vextract.low.u32 %v174
        %v176 = vextract.high.u32 %v174
        %v177 = vmul.u32.u64.compose %v173, %v168
        %v178 = vextract.low.u32 %v177
        %v179 = vextract.high.u32 %v177
        %v180 = vmul.u32 %v173, %v164
        %v181 = vadd.s32 %v176, %v178
        %vm182 = vc.u32 %v176, %v178
        %v183 = vadd.s32 %v179, 1
        %v184 = vsel %vm182, %v183, %v179
        %v185 = vadd.s32 %v180, %v184
        %v186 = vadd.s32 %v185, 536870912
        %v187 = vshrl.u32 %v186, 30
        %v188 = vshll.u32 %v187, 30
        %v189 = vsub.s32 %v185, %v188
        %vm190 = vcmp.lt.s32.totalorder %v189, 0
        %v191 = vsub.s32 0, %v189
        %v192 = vsel %vm190, %v191, %v189
        %v193 = vclz %v192
        %v194 = vsub.s32 %v193, 2
        %vm195 = vcmp.gt.s32.totalorder 0, %v194
        %v196 = vsel %vm195, 0, %v194
        %v197 = vsub.s32 32, %v196
        %v198 = vshll.u32 %v189, %v196
        %v199 = vshrl.u32 %v181, %v197
        %v200 = vor.u32 %v198, %v199
        %v201 = vsub.s32 4294967266, %v196
        %v202 = vadd.s32 %v201, 127
        %v203 = vshll.u32 %v202, 23
        %v204 = vor.u32 4788187, %v203
        %v205 = vand.u32 2147483647, %v204
        %v207 = vcvt.s32.f32 %v200
        %v208 = vmul.f32 %v207, %v205
        %v209 = vxor.u32 %v208, 2147483648
        %v210 = vsel %vm127, %v209, %v208
        %v211 = vsub.s32 4, %v187
        %v212 = vsel %vm127, %v211, %v187
        %v213 = vsel %vm126, %v124, %v210
        %v214 = vsel %vm126, 0, %v212
        %v215 = vcosq.f32.pop %v213
        %v216 = vsinq.f32.pop %v213
        %vm217 = vweird.f32 %v124
        %v218 = vadd.s32 %v214, 3
        %v219 = vand.u32 %v218, 3
        %vm220 = vcmp.lt.s32.totalorder %v219, 2
        %vm221 = vcmp.eq.s32.totalorder %v219, 0
        %v222 = vxor.u32 %v216, 2147483648
        %v223 = vsel %vm221, %v215, %v222
        %vm224 = vcmp.eq.s32.totalorder %v219, 2
        %v225 = vxor.u32 %v215, 2147483648
        %v226 = vsel %vm224, %v225, %v216
        %v227 = vsel %vm220, %v223, %v226
        %v228 = vsel %vm217, nan, %v227
        %vm229 = vcmask 130048
        %230 = vst.msk [vmem:[%s107] sm:$0xff] %vm229, %v228
        %v231 = vand.u32 2147483647, %v124
        %vm232 = vcmp.le.f32.partialorder %v231, 0.7853982
        %vm233 = vcmp.lt.s32.totalorder %v124, 0
        %v234 = vand.u32 %v124, 2139095040
        %v235 = vshrl.u32 %v234, 23
        %v236 = vsub.s32 %v235, 127
        %v237 = vand.u32 2147483647, %v124
        %v238 = vand.u32 %v237, 8388607
        %v239 = vor.u32 %v238, 8388608
        %v240 = vsub.s32 0, %v239
        %v241 = vadd.s32 %v236, 1
        %vm242 = vcmp.gt.s32.totalorder %v241, 0
        %v243 = vsel %vm242, %v241, 0
        %v244 = vshrl.u32 %v243, 5
        %v245 = vand.u32 %v243, 31
        %v246 = vsub.s32 32, %v245
        %v247 = vshrl.u32 683565275, %v246
        %v248 = vshll.u32 683565275, %v245
        %v249 = vshrl.u32 2475754826, %v246
        %v250 = vor.u32 %v248, %v249
        %v251 = vshll.u32 2475754826, %v245
        %v252 = vshrl.u32 2131351028, %v246
        %v253 = vor.u32 %v251, %v252
        %v254 = vshll.u32 2131351028, %v245
        %v255 = vshrl.u32 2102212464, %v246
        %v256 = vor.u32 %v254, %v255
        %v257 = vshll.u32 2102212464, %v245
        %v258 = vshrl.u32 920167782, %v246
        %v259 = vor.u32 %v257, %v258
        %v260 = vshll.u32 920167782, %v245
        %v261 = vshrl.u32 1326507024, %v246
        %v262 = vor.u32 %v260, %v261
        %vm263 = vcmp.lt.s32.totalorder %v244, 1
        %vm264 = vcmp.lt.s32.totalorder %v244, 2
        %vm265 = vcmp.lt.s32.totalorder %v244, 3
        %vm266 = vcmp.lt.s32.totalorder %v244, 4
        %v267 = vsel %vm263, %v247, %v250
        %v268 = vsel %vm266, %v256, 2102212464
        %v269 = vsel %vm265, %v253, %v268
        %v270 = vsel %vm264, %v267, %v269
        %v271 = vsel %vm263, %v250, %v253
        %v272 = vsel %vm266, %v259, 920167782
        %v273 = vsel %vm265, %v256, %v272
        %v274 = vsel %vm264, %v271, %v273
        %v275 = vsel %vm263, %v253, %v256
        %v276 = vsel %vm266, %v262, 1326507024
        %v277 = vsel %vm265, %v259, %v276
        %v278 = vsel %vm264, %v275, %v277
        %v279 = vshll.u32 %v239, 8
        %v280 = vmul.u32.u64.compose %v279, %v278
        %v281 = vextract.low.u32 %v280
        %v282 = vextract.high.u32 %v280
        %v283 = vmul.u32.u64.compose %v279, %v274
        %v284 = vextract.low.u32 %v283
        %v285 = vextract.high.u32 %v283
        %v286 = vmul.u32 %v279, %v270
        %v287 = vadd.s32 %v282, %v284
        %vm288 = vc.u32 %v282, %v284
        %v289 = vadd.s32 %v285, 1
        %v290 = vsel %vm288, %v289, %v285
        %v291 = vadd.s32 %v286, %v290
        %v292 = vadd.s32 %v291, 536870912
        %v293 = vshrl.u32 %v292, 30
        %v294 = vshll.u32 %v293, 30
        %v295 = vsub.s32 %v291, %v294
        %vm296 = vcmp.lt.s32.totalorder %v295, 0
        %v297 = vsub.s32 0, %v295
        %v298 = vsel %vm296, %v297, %v295
        %v299 = vclz %v298
        %v300 = vsub.s32 %v299, 2
        %vm301 = vcmp.gt.s32.totalorder 0, %v300
        %v302 = vsel %vm301, 0, %v300
        %v303 = vsub.s32 32, %v302
        %v304 = vshll.u32 %v295, %v302
        %v305 = vshrl.u32 %v287, %v303
        %v306 = vor.u32 %v304, %v305
        %v307 = vsub.s32 4294967266, %v302
        %v308 = vadd.s32 %v307, 127
        %v309 = vshll.u32 %v308, 23
        %v310 = vor.u32 4788187, %v309
        %v311 = vand.u32 2147483647, %v310
        %v313 = vcvt.s32.f32 %v306
        %v314 = vmul.f32 %v313, %v311
        %v315 = vxor.u32 %v314, 2147483648
        %v316 = vsel %vm233, %v315, %v314
        %v317 = vsub.s32 4, %v293
        %v318 = vsel %vm233, %v317, %v293
        %v319 = vsel %vm232, %v124, %v316
        %v320 = vsel %vm232, 0, %v318
        %v321 = vcosq.f32.pop %v319
        %v322 = vsinq.f32.pop %v319
        %vm323 = vweird.f32 %v124
        %v324 = vand.u32 %v320, 3
        %vm325 = vcmp.lt.s32.totalorder %v324, 2
        %vm326 = vcmp.eq.s32.totalorder %v324, 0
        %v327 = vxor.u32 %v322, 2147483648
        %v328 = vsel %vm326, %v321, %v327
        %vm329 = vcmp.eq.s32.totalorder %v324, 2
        %v330 = vxor.u32 %v321, 2147483648
        %v331 = vsel %vm329, %v330, %v322
        %v332 = vsel %vm325, %v328, %v331
        %v333 = vsel %vm323, nan, %v332
        %335 = vrot.lane.b32.xlu0 %v333, 16
        %v336 = vpop.permute.xlu0 %335
        %vm338 = vcmask 261248
        %339 = vst.msk [vmem:[%s107] sm:$0xff] %vm338, %v336
        %s340 = sand.u32 %s49, 1
        %s341 = scalar_lea.sflag [#allocation3], %s340
        %s342 = sand.u32 %s49, 1
        %s343 = smul.addr %s342, 8
        %s344 = scalar_lea.vmem [#allocation2], %s343
        // Predicated region
        $region25: #{tpu_custom_call.1} parent=23 // pred_check
          %p345 = pneg %p59
        $region26: #{tpu_custom_call.1} parent=23 // pred_check_branch
          %347 = sbr.rel (%p345) target = $region28
        $region27: #{tpu_custom_call.1} parent=23 // pred_region
          %s349 = ssub.s32 128, 128
          %350 = vsyncadd %s341, %s349
          %s351 = smul.addr %s15, 128
          %s352 = scalar_lea.hbm %s1, %s351
          %s354 = sshll.u32 %s344, 4
          %s355 = int_to_ptr.vmem [resolvable:$true] %s354
          %357 = dma.vmem_to_hbm [thread:$0]  %s355, 128, %s352, %s341
        $region28: #{tpu_custom_call.1} parent=23 // pred_fallthru
          _
      $region24: #{tpu_custom_call.1} parent=5 // pred_fallthru
        _
      %p358 = scmp.le.s32.totalorder 2, %s10
      // Predicated region
      $region29: #{tpu_custom_call.1} parent=5 // pred_check
        %p359 = pneg %p358
      $region30: #{tpu_custom_call.1} parent=5 // pred_check_branch
        %361 = sbr.rel (%p359) target = $region32
      $region31: #{tpu_custom_call.1} parent=5 // pred_region
        %s362 = ssub.s32 %s10, 2
        // Predicated region
        $region33: #{tpu_custom_call.1} parent=31 // pred_check
          %p363 = pneg %p65
        $region34: #{tpu_custom_call.1} parent=31 // pred_check_branch
          %365 = sbr.rel (%p363) target = $region36
        $region35: #{tpu_custom_call.1} parent=31 // pred_region
          %s366 = sand.u32 %s50, 1
          %s367 = scalar_lea.sflag [#allocation3], %s366
          %s368 = sand.u32 %s50, 1
          %s369 = smul.addr %s368, 8
          %s370 = scalar_lea.vmem [#allocation2], %s369
          %371 = dma.done %s367, 128
        $region36: #{tpu_custom_call.1} parent=31 // pred_fallthru
          _
      $region32: #{tpu_custom_call.1} parent=5 // pred_fallthru
        _
    $region6: #{tpu_custom_call.1} parent=1 // loop_footer
      %s14 = sadd.s32 1, %s10
    $region7: #{tpu_custom_call.1} parent=1 // loop_footer_branch
      %9 = sbr.rel target = $region3
    $region8: #{tpu_custom_call.1} parent=1 // loop_exit
      _
    %372 = vsyncpa [#allocation3], 1
    %s373 = scalar_lea.sflag [#allocation3], 1
    %374 = vsyncpa %s373, 1

</llo_original>
